<compile_context>
chip_gen: v6e
topology: v6e:2x2x1
jax: 0.10.0
libtpu: 0.0.40
codegen_flags: <defaults>
</compile_context>

<pallas_src>
import functools

import jax
import jax.numpy as jnp
import numpy as np
from jax.experimental import pallas as pl
from jax.experimental.pallas import tpu as pltpu

EPS = 1e-5


# ---------------------------------------------------------------------------
# Kernel
# ---------------------------------------------------------------------------
def double_conv_kernel(x_ref, w1_ref, t1_ref, w2_ref, t2_ref, o_ref,
                       lhs1_ref, lhs2_ref, *, nb, H, W, Cin, Cmid):
    """One grid step processes `nb` images.

    x_ref:   (nb*H, W*Cin)            lane-packed input rows
    w*_ref:  block-banded folded conv weights
    t*_ref:  (1, W*C) folded bias/BN shift (f32)
    o_ref:   (nb*H, W*Cout)           lane-packed output rows
    lhs*_ref: (nb*H, 3*(W+2)*C)       matmul LHS scratch
    """
    cdt = lhs1_ref.dtype
    Wp = W + 2

    def build_lhs(lhs_ref, act, c):
        # Zero the whole LHS first (cheap: a few vregs). The zeros are the
        # spatial padding (left/right pad lanes, top/bottom pad rows). Done
        # every step so each TensorCore's private scratch is always valid.
        lhs_ref[...] = jnp.zeros_like(lhs_ref)
        # dy = 1: every output row reads its own input row -> one lane-dense
        # slab write covering all nb images at once.
        lhs_ref[:, Wp * c + c:Wp * c + (W + 1) * c] = act
        for b in range(nb):
            r = b * H
            img = act[r:r + H, :]
            # dy = 0: output rows 1..H-1 read input rows 0..H-2.
            lhs_ref[r + 1:r + H, c:(W + 1) * c] = img[:H - 1, :]
            # dy = 2: output rows 0..H-2 read input rows 1..H-1.
            lhs_ref[r:r + H - 1, 2 * Wp * c + c:2 * Wp * c + (W + 1) * c] = img[1:, :]

    # ---- conv1 (+ folded bias/BN) + ReLU: one batched matmul for nb images.
    build_lhs(lhs1_ref, x_ref[...], Cin)
    y1 = jnp.dot(lhs1_ref[...], w1_ref[...], preferred_element_type=jnp.float32)
    y1 = jnp.maximum(y1 + t1_ref[...], 0.0)               # (nb*H, W*Cmid) f32

    # ---- conv2 (+ folded bias/BN) + ReLU.
    build_lhs(lhs2_ref, y1.astype(cdt), Cmid)
    y2 = jnp.dot(lhs2_ref[...], w2_ref[...], preferred_element_type=jnp.float32)

    # Lane-dense store: the matmul result IS the (rows, W*Cout) output slab.
    o_ref[...] = jnp.maximum(y2 + t2_ref[...], 0.0).astype(o_ref.dtype)


# ---------------------------------------------------------------------------
# Host-side weight preparation
# ---------------------------------------------------------------------------
def _prepare_conv(w_hwio, b, gamma, beta, mean, var, W, compute_dtype):
    """Fold conv bias + inference BN into the weights, then repack them into a
    block-banded matrix so the conv over a lane-packed padded row slab
    (rows, 3*(W+2)*cin) becomes a single matmul producing (rows, W*cout).

      y = ((conv(x, w) + b) - mean) * s + beta,   s = gamma / sqrt(var + eps)
        = conv(x, w * s) + ((b - mean) * s + beta)
    """
    w = np.asarray(w_hwio, np.float32)
    s = np.asarray(gamma, np.float32) / np.sqrt(np.asarray(var, np.float32) + EPS)
    w = w * s                                           # (3,3,cin,cout)*(cout,)
    t = (np.asarray(b, np.float32) - np.asarray(mean, np.float32)) * s \
        + np.asarray(beta, np.float32)

    kh, kw, cin, cout = w.shape
    Wp = W + 2
    mat = np.zeros((kh * Wp * cin, W * cout), np.float32)
    for dy in range(kh):
        for dx in range(kw):
            for x in range(W):
                r0 = dy * Wp * cin + (x + dx) * cin
                mat[r0:r0 + cin, x * cout:(x + 1) * cout] = w[dy, dx]
    t_row = np.tile(t, W)[None, :]                      # (1, W*cout)
    return jnp.asarray(mat, compute_dtype), jnp.asarray(t_row, jnp.float32)


def _vmem_limit_bytes(nb, H, W, Cin, Cmid, Cout, compute_dtype):
    """Working-set-derived VMEM limit (instead of a hardcoded 32 MiB)."""
    it = jnp.dtype(compute_dtype).itemsize
    Wp = W + 2
    rows = nb * H
    dbuf = 2 * rows * (W * Cin * it + W * Cout * 4)      # in/out blocks x2
    wts = 2 * it * (3 * Wp * Cin * W * Cmid + 3 * Wp * Cmid * W * Cout)
    bias = 2 * 4 * W * (Cmid + Cout)
    scratch = rows * 3 * Wp * (Cin + Cmid) * it
    need = dbuf + wts + bias + scratch
    # 2x headroom for compiler temporaries; clamp so the limit is always valid
    # on v7x (64 MiB physical VMEM, 32 MiB scoped default).
    return int(min(max(2 * need, 8 << 20), 32 << 20))


# ---------------------------------------------------------------------------
# Wrapper
# ---------------------------------------------------------------------------
def double_conv_forward(x_nchw, params, *, compute_dtype=jnp.float32,
                        images_per_step=1):
    """x_nchw: (N, C_in, H, W) float32 -> (N, C_out, H, W).

    images_per_step: images folded into one grid step / one matmul. On v7x
    keep N // images_per_step >= 2 (2 TensorCores); on v5e/v6e folding the
    whole batch into one step is fine. compute_dtype=bf16 only pays off on
    v6e/v7x (v5e's VPU is not bf16-native).
    """
    N, Cin, H, W = x_nchw.shape
    Cmid = params["w1"].shape[3]
    Cout = params["w2"].shape[3]
    nb = images_per_step
    assert N % nb == 0, "batch must be divisible by images_per_step"

    # NCHW -> NHWC -> (N*H, W*Cin) lane-packed slab (free reshapes in XLA).
    x_slab = jnp.transpose(x_nchw, (0, 2, 3, 1)).reshape(N * H, W * Cin)
    x_slab = x_slab.astype(compute_dtype)

    w1, t1 = _prepare_conv(params["w1"], params["b1"], params["g1"],
                           params["be1"], params["m1"], params["v1"],
                           W, compute_dtype)
    w2, t2 = _prepare_conv(params["w2"], params["b2"], params["g2"],
                           params["be2"], params["m2"], params["v2"],
                           W, compute_dtype)

    kernel = functools.partial(double_conv_kernel,
                               nb=nb, H=H, W=W, Cin=Cin, Cmid=Cmid)

    out_flat = pl.pallas_call(
        kernel,
        out_shape=jax.ShapeDtypeStruct((N * H, W * Cout), x_nchw.dtype),
        grid_spec=pltpu.PrefetchScalarGridSpec(
            num_scalar_prefetch=0,
            grid=(N // nb,),
            in_specs=[
                pl.BlockSpec((nb * H, W * Cin), lambda n: (n, 0)),
                pl.BlockSpec((3 * (W + 2) * Cin, W * Cmid), lambda n: (0, 0)),
                pl.BlockSpec((1, W * Cmid), lambda n: (0, 0)),
                pl.BlockSpec((3 * (W + 2) * Cmid, W * Cout), lambda n: (0, 0)),
                pl.BlockSpec((1, W * Cout), lambda n: (0, 0)),
            ],
            out_specs=pl.BlockSpec((nb * H, W * Cout), lambda n: (n, 0)),
            scratch_shapes=[
                pltpu.VMEM((nb * H, 3 * (W + 2) * Cin), compute_dtype),
                pltpu.VMEM((nb * H, 3 * (W + 2) * Cmid), compute_dtype),
            ],
        ),
        compiler_params=pltpu.CompilerParams(
            dimension_semantics=("parallel",),
            vmem_limit_bytes=_vmem_limit_bytes(nb, H, W, Cin, Cmid, Cout,
                                               compute_dtype),
        ),
    )(x_slab, w1, t1, w2, t2)

    # (N*H, W*Cout) -> (N, H, W, Cout) -> NCHW (free views / one XLA transpose).
    return jnp.transpose(out_flat.reshape(N, H, W, Cout), (0, 3, 1, 2))


# ---------------------------------------------------------------------------
# Synthetic parameters + pure-JAX reference
# ---------------------------------------------------------------------------
def make_params(key, c_in, c_out):
    """Deterministic synthetic parameters (HWIO conv weights, BN stats)."""
    c_mid = c_out
    ks = jax.random.split(key, 6)

    def bn(k, c):
        k1, k2, k3, k4 = jax.random.split(k, 4)
        return (1.0 + 0.1 * jax.random.normal(k1, (c,), jnp.float32),   # gamma
                0.1 * jax.random.normal(k2, (c,), jnp.float32),         # beta
                0.1 * jax.random.normal(k3, (c,), jnp.float32),         # mean
                1.0 + 0.1 * jax.random.uniform(k4, (c,), jnp.float32))  # var

    g1, be1, m1, v1 = bn(ks[0], c_mid)
    g2, be2, m2, v2 = bn(ks[1], c_out)
    return {
        "w1": 0.1 * jax.random.normal(ks[2], (3, 3, c_in, c_mid), jnp.float32),
        "b1": 0.05 * jax.random.normal(ks[3], (c_mid,), jnp.float32),
        "g1": g1, "be1": be1, "m1": m1, "v1": v1,
        "w2": 0.1 * jax.random.normal(ks[4], (3, 3, c_mid, c_out), jnp.float32),
        "b2": 0.05 * jax.random.normal(ks[5], (c_out,), jnp.float32),
        "g2": g2, "be2": be2, "m2": m2, "v2": v2,
    }


def ref_forward(x_nchw, p):
    """Pure-JAX (XLA) reference with identical (eval-mode BN) semantics."""

    def conv_bn_relu(y, w, b, g, be, m, v):
        w_oihw = jnp.transpose(w, (3, 2, 0, 1))
        y = jax.lax.conv_general_dilated(
            y, w_oihw, (1, 1), "SAME",
            dimension_numbers=("NCHW", "OIHW", "NCHW"))
        y = y + b[None, :, None, None]
        y = (y - m[None, :, None, None]) / jnp.sqrt(v[None, :, None, None] + EPS)
        y = y * g[None, :, None, None] + be[None, :, None, None]
        return jnp.maximum(y, 0.0)

    y = conv_bn_relu(x_nchw, p["w1"], p["b1"], p["g1"], p["be1"], p["m1"], p["v1"])
    y = conv_bn_relu(y, p["w2"], p["b2"], p["g2"], p["be2"], p["m2"], p["v2"])
    return y


if __name__ == "__main__":
    key = jax.random.PRNGKey(0)
    kx, kp = jax.random.split(key)

    N, C_IN, H, W = 2, 4, 16, 16
    C_OUT = 8

    x = jax.random.normal(kx, (N, C_IN, H, W), jnp.float32)
    params = make_params(kp, C_IN, C_OUT)

    ref = jax.block_until_ready(ref_forward(x, params))

    # f32 path, 1 image per step (grid length 2 -> both v7x TensorCores busy).
    out = jax.block_until_ready(double_conv_forward(x, params))
    assert out.shape == (N, C_OUT, H, W), out.shape
    assert jnp.allclose(out, ref, atol=1e-3, rtol=1e-3), \
        float(jnp.max(jnp.abs(out - ref)))

    # bf16 matmul path (v6e/v7x) with the whole batch folded into one step
    # (one batched matmul per conv) — looser tolerance vs the f32 reference.
    out_bf = jax.block_until_ready(
        double_conv_forward(x, params, compute_dtype=jnp.bfloat16,
                            images_per_step=2))
    assert out_bf.shape == (N, C_OUT, H, W), out_bf.shape
    assert jnp.allclose(out_bf, ref, atol=5e-2, rtol=5e-2), \
        float(jnp.max(jnp.abs(out_bf - ref)))

    print("KERNEL_OK")
</pallas_src>

<mosaic_0001>
module attributes {stable_mosaic.version = 11 : i64} {
  func.func @double_conv_kernel(%arg0: i32, %arg1: memref<16x64xf32, #tpu.memory_space<vmem>>, %arg2: memref<216x128xf32, #tpu.memory_space<vmem>>, %arg3: memref<1x128xf32, #tpu.memory_space<vmem>>, %arg4: memref<432x128xf32, #tpu.memory_space<vmem>>, %arg5: memref<1x128xf32, #tpu.memory_space<vmem>>, %arg6: memref<16x128xf32, #tpu.memory_space<vmem>>, %arg7: memref<16x216xf32, #tpu.memory_space<vmem>>, %arg8: memref<16x432xf32, #tpu.memory_space<vmem>>) attributes {dimension_semantics = [#tpu.dimension_semantics<parallel>], iteration_bounds = array<i64: 2>, scalar_prefetch = 0 : i64, scratch_operands = 2 : i64, tpu.core_type = #tpu.core_type<tc>, window_params = [{transform_indices = @transform_0, window_bounds = array<i64: 16, 64>}, {pipeline_mode = #tpu.pipeline_mode<synchronous>, transform_indices = @transform_1, window_bounds = array<i64: 216, 128>}, {pipeline_mode = #tpu.pipeline_mode<synchronous>, transform_indices = @transform_2, window_bounds = array<i64: 1, 128>}, {pipeline_mode = #tpu.pipeline_mode<synchronous>, transform_indices = @transform_3, window_bounds = array<i64: 432, 128>}, {pipeline_mode = #tpu.pipeline_mode<synchronous>, transform_indices = @transform_4, window_bounds = array<i64: 1, 128>}, {transform_indices = @transform_5, window_bounds = array<i64: 16, 128>}]} {
    %c0 = arith.constant 0 : index
    %c0_0 = arith.constant 0 : index
    %0 = vector.load %arg1[%c0, %c0_0] : memref<16x64xf32, #tpu.memory_space<vmem>>, vector<16x64xf32>
    %cst = arith.constant 0.000000e+00 : f32
    %1 = vector.broadcast %cst : f32 to vector<16x216xf32>
    %c0_1 = arith.constant 0 : index
    %c0_2 = arith.constant 0 : index
    %2 = vector.load %arg7[%c0_1, %c0_2] : memref<16x216xf32, #tpu.memory_space<vmem>>, vector<16x216xf32>
    tpu.vector_store %arg7[%c0_1, %c0_2], %1 {strides = array<i32>} : memref<16x216xf32, #tpu.memory_space<vmem>>, vector<16x216xf32>,
    %c0_3 = arith.constant 0 : index
    %c76 = arith.constant 76 : index
    %3 = vector.load %arg7[%c0_3, %c76] : memref<16x216xf32, #tpu.memory_space<vmem>>, vector<16x64xf32>
    tpu.vector_store %arg7[%c0_3, %c76], %0 {strides = array<i32>} : memref<16x216xf32, #tpu.memory_space<vmem>>, vector<16x64xf32>,
    %4 = vector.extract_strided_slice %0 {offsets = [0, 0], sizes = [15, 64], strides = [1, 1]} : vector<16x64xf32> to vector<15x64xf32>
    %c1 = arith.constant 1 : index
    %c4 = arith.constant 4 : index
    %5 = vector.load %arg7[%c1, %c4] : memref<16x216xf32, #tpu.memory_space<vmem>>, vector<15x64xf32>
    tpu.vector_store %arg7[%c1, %c4], %4 {strides = array<i32>} : memref<16x216xf32, #tpu.memory_space<vmem>>, vector<15x64xf32>,
    %6 = vector.extract_strided_slice %0 {offsets = [1, 0], sizes = [15, 64], strides = [1, 1]} : vector<16x64xf32> to vector<15x64xf32>
    %c0_4 = arith.constant 0 : index
    %c148 = arith.constant 148 : index
    %7 = vector.load %arg7[%c0_4, %c148] : memref<16x216xf32, #tpu.memory_space<vmem>>, vector<15x64xf32>
    tpu.vector_store %arg7[%c0_4, %c148], %6 {strides = array<i32>} : memref<16x216xf32, #tpu.memory_space<vmem>>, vector<15x64xf32>,
    %c0_5 = arith.constant 0 : index
    %c0_6 = arith.constant 0 : index
    %8 = vector.load %arg7[%c0_5, %c0_6] : memref<16x216xf32, #tpu.memory_space<vmem>>, vector<16x216xf32>
    %c0_7 = arith.constant 0 : index
    %c0_8 = arith.constant 0 : index
    %9 = vector.load %arg2[%c0_7, %c0_8] : memref<216x128xf32, #tpu.memory_space<vmem>>, vector<216x128xf32>
    %cst_9 = arith.constant dense<0.000000e+00> : vector<16x128xf32>
    %10 = tpu.matmul %8, %9, %cst_9 {dimension_numbers = #tpu.dot_dimension_numbers<[1], [0], [0], [1], [0, 0, 1, 1], [], []>} : vector<16x216xf32>, vector<216x128xf32>, vector<16x128xf32> -> vector<16x128xf32>
    %c0_10 = arith.constant 0 : index
    %c0_11 = arith.constant 0 : index
    %11 = vector.load %arg3[%c0_10, %c0_11] : memref<1x128xf32, #tpu.memory_space<vmem>>, vector<1x128xf32>
    %12 = vector.broadcast %11 : vector<1x128xf32> to vector<16x128xf32>
    %13 = arith.addf %10, %12 : vector<16x128xf32>
    %cst_12 = arith.constant 0.000000e+00 : f32
    %14 = vector.broadcast %cst_12 : f32 to vector<16x128xf32>
    %15 = arith.maximumf %13, %14 : vector<16x128xf32>
    %cst_13 = arith.constant 0.000000e+00 : f32
    %16 = vector.broadcast %cst_13 : f32 to vector<16x432xf32>
    %c0_14 = arith.constant 0 : index
    %c0_15 = arith.constant 0 : index
    %17 = vector.load %arg8[%c0_14, %c0_15] : memref<16x432xf32, #tpu.memory_space<vmem>>, vector<16x432xf32>
    tpu.vector_store %arg8[%c0_14, %c0_15], %16 {strides = array<i32>} : memref<16x432xf32, #tpu.memory_space<vmem>>, vector<16x432xf32>,
    %c0_16 = arith.constant 0 : index
    %c152 = arith.constant 152 : index
    %18 = vector.load %arg8[%c0_16, %c152] : memref<16x432xf32, #tpu.memory_space<vmem>>, vector<16x128xf32>
    tpu.vector_store %arg8[%c0_16, %c152], %15 {strides = array<i32>} : memref<16x432xf32, #tpu.memory_space<vmem>>, vector<16x128xf32>,
    %19 = vector.extract_strided_slice %15 {offsets = [0, 0], sizes = [15, 128], strides = [1, 1]} : vector<16x128xf32> to vector<15x128xf32>
    %c1_17 = arith.constant 1 : index
    %c8 = arith.constant 8 : index
    %20 = vector.load %arg8[%c1_17, %c8] : memref<16x432xf32, #tpu.memory_space<vmem>>, vector<15x128xf32>
    tpu.vector_store %arg8[%c1_17, %c8], %19 {strides = array<i32>} : memref<16x432xf32, #tpu.memory_space<vmem>>, vector<15x128xf32>,
    %21 = vector.extract_strided_slice %15 {offsets = [1, 0], sizes = [15, 128], strides = [1, 1]} : vector<16x128xf32> to vector<15x128xf32>
    %c0_18 = arith.constant 0 : index
    %c296 = arith.constant 296 : index
    %22 = vector.load %arg8[%c0_18, %c296] : memref<16x432xf32, #tpu.memory_space<vmem>>, vector<15x128xf32>
    tpu.vector_store %arg8[%c0_18, %c296], %21 {strides = array<i32>} : memref<16x432xf32, #tpu.memory_space<vmem>>, vector<15x128xf32>,
    %c0_19 = arith.constant 0 : index
    %c0_20 = arith.constant 0 : index
    %23 = vector.load %arg8[%c0_19, %c0_20] : memref<16x432xf32, #tpu.memory_space<vmem>>, vector<16x432xf32>
    %c0_21 = arith.constant 0 : index
    %c0_22 = arith.constant 0 : index
    %24 = vector.load %arg4[%c0_21, %c0_22] : memref<432x128xf32, #tpu.memory_space<vmem>>, vector<432x128xf32>
    %cst_23 = arith.constant dense<0.000000e+00> : vector<16x128xf32>
    %25 = tpu.matmul %23, %24, %cst_23 {dimension_numbers = #tpu.dot_dimension_numbers<[1], [0], [0], [1], [0, 0, 1, 1], [], []>} : vector<16x432xf32>, vector<432x128xf32>, vector<16x128xf32> -> vector<16x128xf32>
    %c0_24 = arith.constant 0 : index
    %c0_25 = arith.constant 0 : index
    %26 = vector.load %arg5[%c0_24, %c0_25] : memref<1x128xf32, #tpu.memory_space<vmem>>, vector<1x128xf32>
    %27 = vector.broadcast %26 : vector<1x128xf32> to vector<16x128xf32>
    %28 = arith.addf %25, %27 : vector<16x128xf32>
    %cst_26 = arith.constant 0.000000e+00 : f32
    %29 = vector.broadcast %cst_26 : f32 to vector<16x128xf32>
    %30 = arith.maximumf %28, %29 : vector<16x128xf32>
    %c0_27 = arith.constant 0 : index
    %c0_28 = arith.constant 0 : index
    %31 = vector.load %arg6[%c0_27, %c0_28] : memref<16x128xf32, #tpu.memory_space<vmem>>, vector<16x128xf32>
    tpu.vector_store %arg6[%c0_27, %c0_28], %30 {strides = array<i32>} : memref<16x128xf32, #tpu.memory_space<vmem>>, vector<16x128xf32>,
    return
  }
  func.func @transform_0(%arg0: i32) -> (i32, i32) {
    %c0_i32 = arith.constant 0 : i32
    %c0_i32_0 = arith.constant 0 : i32
    return %arg0, %c0_i32 : i32, i32
  }
  func.func @transform_1(%arg0: i32) -> (i32, i32) {
    %c0_i32 = arith.constant 0 : i32
    %c0_i32_0 = arith.constant 0 : i32
    %c0_i32_1 = arith.constant 0 : i32
    return %c0_i32, %c0_i32_0 : i32, i32
  }
  func.func @transform_2(%arg0: i32) -> (i32, i32) {
    %c0_i32 = arith.constant 0 : i32
    %c0_i32_0 = arith.constant 0 : i32
    %c0_i32_1 = arith.constant 0 : i32
    return %c0_i32, %c0_i32_0 : i32, i32
  }
  func.func @transform_3(%arg0: i32) -> (i32, i32) {
    %c0_i32 = arith.constant 0 : i32
    %c0_i32_0 = arith.constant 0 : i32
    %c0_i32_1 = arith.constant 0 : i32
    return %c0_i32, %c0_i32_0 : i32, i32
  }
  func.func @transform_4(%arg0: i32) -> (i32, i32) {
    %c0_i32 = arith.constant 0 : i32
    %c0_i32_0 = arith.constant 0 : i32
    %c0_i32_1 = arith.constant 0 : i32
    return %c0_i32, %c0_i32_0 : i32, i32
  }
  func.func @transform_5(%arg0: i32) -> (i32, i32) {
    %c0_i32 = arith.constant 0 : i32
    %c0_i32_0 = arith.constant 0 : i32
    return %arg0, %c0_i32 : i32, i32
  }
}

</mosaic_0001>

<llo_original>
// kernel: tpu_custom_call.1
$region0: #{tpu_custom_call.1}
  #allocation0 [shape = 'u32[]', space=smem, size = 0x4, offset = 0x4, fixed_abs, tag = 'smem constant byte address 0x4 - core index']
  #allocation1 [shape = 'u32[144,128]{1,0:T(1,128)}', space=vmem, size = 0x12000, scoped, tag = 'internal scratch']
  #allocation2 [shape = 'f32[16,216]{1,0:T(8,128)}', space=vmem, size = 0x4000, scoped, tag = 'scratch operand']
  #allocation3 [shape = 'f32[16,432]{1,0:T(8,128)}', space=vmem, size = 0x8000, scoped, tag = 'scratch operand']
  %s0 = inlined_call_operand.hbm [shape: f32[32,64], index: 0, kind: input, shape index: {}]
  %s1 = inlined_call_operand.hbm [shape: f32[216,128], index: 1, kind: input, shape index: {}]
  %s2 = inlined_call_operand.vmem [shape: f32[1,128], index: 2, kind: input, shape index: {}]
  %s3 = inlined_call_operand.hbm [shape: f32[432,128], index: 3, kind: input, shape index: {}]
  %s4 = inlined_call_operand.vmem [shape: f32[1,128], index: 4, kind: input, shape index: {}]
  %s5 = inlined_call_operand.hbm [shape: f32[32,128], index: 5, kind: output, shape index: {}]
  %s6 = sld [smem:[#allocation0]]
  $region65: #{tpu_custom_call.1} parent=0
    _
  %s8 = ssub.s32 1, %s6
  %s9 = scalar_select 0, %s8, %s6
  $region1: #{tpu_custom_call.1} parent=0
    #allocation4 [shape = 'u8[16384]{0}', space=vmem, size = 0x4000, scoped, tag = 'input window, operand 0']
    #allocation5 [shape = 's32[2]{0}', space=sflag, size = 0x8, scoped, tag = 'scoped memory for tpu_custom_call.1']
    #allocation6 [shape = 's32[2]{0}', space=sflag, size = 0x8, scoped, tag = 'scoped memory for tpu_custom_call.1']
    #allocation7 [shape = 'u8[110592]{0}', space=vmem, size = 0x1b000, scoped, tag = 'input window, operand 1, single buffered']
    #allocation8 [shape = 's32[1]{0}', space=sflag, size = 0x4, scoped, tag = 'scoped memory for tpu_custom_call.1']
    #allocation9 [shape = 'u8[221184]{0}', space=vmem, size = 0x36000, scoped, tag = 'input window, operand 3, single buffered']
    #allocation10 [shape = 'u8[16384]{0}', space=vmem, size = 0x4000, scoped, tag = 'output window, operand 0']
    %10 = vsyncpa [#allocation5], 0
    %s11 = scalar_lea.sflag [#allocation5], 1
    %12 = vsyncpa %s11, 0
    %13 = vsyncpa [#allocation8], 0
    %14 = vsyncpa [#allocation6], 0
    %s15 = scalar_lea.sflag [#allocation6], 1
    %16 = vsyncpa %s15, 0
    loop: start=0, step=1, limit=4
    $region2: #{tpu_custom_call.1} parent=1 // loop_pre_header
      _
    $region3: #{tpu_custom_call.1} parent=1 // loop_header
      %s18 = sphi 0, %s22
      %p19 = scmp.ge.s32.totalorder %s18, 4
      %s28 = sphi 0, %s30
      %s31 = sphi 0, %s28
      %s32 = sphi 0, %s31
      %s48 = sphi 0, %s32
      %s52 = sphi 0, %s52
      %s54 = sphi 0, %s52
      %s55 = sphi 0, %s54
      %s69 = sphi 0, %s55
      %s73 = sphi 0, %s73
      %s75 = sphi 0, %s73
      %s76 = sphi 0, %s75
      %s90 = sphi 0, %s76
      %s94 = sphi 0, %s94
      %s96 = sphi 0, %s94
      %s97 = sphi 0, %s96
      %s111 = sphi 0, %s97
      %s115 = sphi 0, %s115
      %s117 = sphi 0, %s115
      %s118 = sphi 0, %s117
      %s132 = sphi 0, %s118
      %s138 = sphi 0, %s140
      %s141 = sphi 0, %s138
      %s142 = sphi 0, %s141
      %s158 = sphi 0, %s142
    $region4: #{tpu_custom_call.1} parent=1 // loop_header_branch
      %21 = sbr.rel (%p19) target = $region8
    $region5: #{tpu_custom_call.1} parent=1 // loop_body
      %s23 = ssub.s32 %s18, 1
      %s24 = ssub.s32 %s18, 2
      %s25 = sadd.s32 %s18, 1
      %s26 = ssub.s32 %s18, %s25
      %p27 = scmp.eq.s32.totalorder %s26, 0
      %s29 = sadd.s32 %s28, 1
      %s30 = scalar_select %p27, %s28, %s29
      %p33 = pneg %p27
      %p34 = scmp.eq.s32.totalorder %s18, 1
      %p35 = por %p33, %p34
      %p36 = scmp.ne.s32.totalorder %s28, %s31
      %p37 = scmp.eq.s32.totalorder %s18, 0
      %p38 = por %p36, %p37
      %p39 = scmp.ne.s32.totalorder %s28, %s31
      %p40 = scmp.eq.s32.totalorder %s23, 1
      %p41 = por %p39, %p40
      %p42 = scmp.ne.s32.totalorder %s31, %s32
      %p43 = scmp.eq.s32.totalorder %s23, 0
      %p44 = por %p42, %p43
      %p45 = scmp.ne.s32.totalorder %s31, %s32
      %p46 = scmp.eq.s32.totalorder %s24, 1
      %p47 = por %p45, %p46
      %p49 = scmp.ne.s32.totalorder %s32, %s48
      %p50 = scmp.eq.s32.totalorder %s24, 0
      %p51 = por %p49, %p50
      %s53 = sadd.s32 %s52, 1
      %p56 = scmp.eq.s32.totalorder %s18, 1
      %p57 = scmp.ne.s32.totalorder %s52, %s54
      %p58 = scmp.eq.s32.totalorder %s18, 0
      %p59 = por %p57, %p58
      %p60 = scmp.ne.s32.totalorder %s52, %s54
      %p61 = scmp.eq.s32.totalorder %s23, 1
      %p62 = por %p60, %p61
      %p63 = scmp.ne.s32.totalorder %s54, %s55
      %p64 = scmp.eq.s32.totalorder %s23, 0
      %p65 = por %p63, %p64
      %p66 = scmp.ne.s32.totalorder %s54, %s55
      %p67 = scmp.eq.s32.totalorder %s24, 1
      %p68 = por %p66, %p67
      %p70 = scmp.ne.s32.totalorder %s55, %s69
      %p71 = scmp.eq.s32.totalorder %s24, 0
      %p72 = por %p70, %p71
      %s74 = sadd.s32 %s73, 1
      %p77 = scmp.eq.s32.totalorder %s18, 1
      %p78 = scmp.ne.s32.totalorder %s73, %s75
      %p79 = scmp.eq.s32.totalorder %s18, 0
      %p80 = por %p78, %p79
      %p81 = scmp.ne.s32.totalorder %s73, %s75
      %p82 = scmp.eq.s32.totalorder %s23, 1
      %p83 = por %p81, %p82
      %p84 = scmp.ne.s32.totalorder %s75, %s76
      %p85 = scmp.eq.s32.totalorder %s23, 0
      %p86 = por %p84, %p85
      %p87 = scmp.ne.s32.totalorder %s75, %s76
      %p88 = scmp.eq.s32.totalorder %s24, 1
      %p89 = por %p87, %p88
      %p91 = scmp.ne.s32.totalorder %s76, %s90
      %p92 = scmp.eq.s32.totalorder %s24, 0
      %p93 = por %p91, %p92
      %s95 = sadd.s32 %s94, 1
      %p98 = scmp.eq.s32.totalorder %s18, 1
      %p99 = scmp.ne.s32.totalorder %s94, %s96
      %p100 = scmp.eq.s32.totalorder %s18, 0
      %p101 = por %p99, %p100
      %p102 = scmp.ne.s32.totalorder %s94, %s96
      %p103 = scmp.eq.s32.totalorder %s23, 1
      %p104 = por %p102, %p103
      %p105 = scmp.ne.s32.totalorder %s96, %s97
      %p106 = scmp.eq.s32.totalorder %s23, 0
      %p107 = por %p105, %p106
      %p108 = scmp.ne.s32.totalorder %s96, %s97
      %p109 = scmp.eq.s32.totalorder %s24, 1
      %p110 = por %p108, %p109
      %p112 = scmp.ne.s32.totalorder %s97, %s111
      %p113 = scmp.eq.s32.totalorder %s24, 0
      %p114 = por %p112, %p113
      %s116 = sadd.s32 %s115, 1
      %p119 = scmp.eq.s32.totalorder %s18, 1
      %p120 = scmp.ne.s32.totalorder %s115, %s117
      %p121 = scmp.eq.s32.totalorder %s18, 0
      %p122 = por %p120, %p121
      %p123 = scmp.ne.s32.totalorder %s115, %s117
      %p124 = scmp.eq.s32.totalorder %s23, 1
      %p125 = por %p123, %p124
      %p126 = scmp.ne.s32.totalorder %s117, %s118
      %p127 = scmp.eq.s32.totalorder %s23, 0
      %p128 = por %p126, %p127
      %p129 = scmp.ne.s32.totalorder %s117, %s118
      %p130 = scmp.eq.s32.totalorder %s24, 1
      %p131 = por %p129, %p130
      %p133 = scmp.ne.s32.totalorder %s118, %s132
      %p134 = scmp.eq.s32.totalorder %s24, 0
      %p135 = por %p133, %p134
      %s136 = ssub.s32 %s18, %s25
      %p137 = scmp.eq.s32.totalorder %s136, 0
      %s139 = sadd.s32 %s138, 1
      %s140 = scalar_select %p137, %s138, %s139
      %p143 = pneg %p137
      %p144 = scmp.eq.s32.totalorder %s18, 1
      %p145 = por %p143, %p144
      %p146 = scmp.ne.s32.totalorder %s138, %s141
      %p147 = scmp.eq.s32.totalorder %s18, 0
      %p148 = por %p146, %p147
      %p149 = scmp.ne.s32.totalorder %s138, %s141
      %p150 = scmp.eq.s32.totalorder %s23, 1
      %p151 = por %p149, %p150
      %p152 = scmp.ne.s32.totalorder %s141, %s142
      %p153 = scmp.eq.s32.totalorder %s23, 0
      %p154 = por %p152, %p153
      %p155 = scmp.ne.s32.totalorder %s141, %s142
      %p156 = scmp.eq.s32.totalorder %s24, 1
      %p157 = por %p155, %p156
      %p159 = scmp.ne.s32.totalorder %s142, %s158
      %p160 = scmp.eq.s32.totalorder %s24, 0
      %p161 = por %p159, %p160
      %p162 = scmp.le.s32.totalorder 1, %s18
      %p163 = scmp.lt.s32.totalorder %s18, 3
      %p164 = pnand %p162, %p163
      %p165 = pneg %p164
      // Predicated region
      $region9: #{tpu_custom_call.1} parent=5 // pred_check
        _
      $region10: #{tpu_custom_call.1} parent=5 // pred_check_branch
        %167 = sbr.rel (%p164) target = $region12
      $region11: #{tpu_custom_call.1} parent=5 // pred_region
        %s168 = ssub.s32 %s18, 1
        // Predicated region
        $region13: #{tpu_custom_call.1} parent=11 // pred_check
          %p169 = pneg %p65
        $region14: #{tpu_custom_call.1} parent=11 // pred_check_branch
          %171 = sbr.rel (%p169) target = $region16
        $region15: #{tpu_custom_call.1} parent=11 // pred_region
          %s173 = ssub.s32 3456, 3456
          %174 = vsyncadd [#allocation8], %s173
          %s175 = sshll.u32 [#allocation7], 4
          %s176 = int_to_ptr.vmem [resolvable:$true] %s175
          %181 = dma.hbm_to_vmem [thread:$0]  %s1, 3456, %s176, [#allocation8], 128, 128, 8
        $region16: #{tpu_custom_call.1} parent=11 // pred_fallthru
          _
        // Predicated region
        $region17: #{tpu_custom_call.1} parent=11 // pred_check
          %p182 = pneg %p86
        $region18: #{tpu_custom_call.1} parent=11 // pred_check_branch
          %184 = sbr.rel (%p182) target = $region20
        $region19: #{tpu_custom_call.1} parent=11 // pred_region
          _
        $region20: #{tpu_custom_call.1} parent=11 // pred_fallthru
          _
        // Predicated region
        $region21: #{tpu_custom_call.1} parent=11 // pred_check
          %p185 = pneg %p107
        $region22: #{tpu_custom_call.1} parent=11 // pred_check_branch
          %187 = sbr.rel (%p185) target = $region24
        $region23: #{tpu_custom_call.1} parent=11 // pred_region
          %s189 = ssub.s32 6912, 6912
          %190 = vsyncadd [#allocation8], %s189
          %s191 = sshll.u32 [#allocation9], 4
          %s192 = int_to_ptr.vmem [resolvable:$true] %s191
          %197 = dma.hbm_to_vmem [thread:$0]  %s3, 6912, %s192, [#allocation8], 128, 128, 8
        $region24: #{tpu_custom_call.1} parent=11 // pred_fallthru
          _
        // Predicated region
        $region25: #{tpu_custom_call.1} parent=11 // pred_check
          %p198 = pneg %p128
        $region26: #{tpu_custom_call.1} parent=11 // pred_check_branch
          %200 = sbr.rel (%p198) target = $region28
        $region27: #{tpu_custom_call.1} parent=11 // pred_region
          _
        $region28: #{tpu_custom_call.1} parent=11 // pred_fallthru
          _
      $region12: #{tpu_custom_call.1} parent=5 // pred_fallthru
        _
      %p201 = scmp.lt.s32.totalorder %s18, 2
      // Predicated region
      $region29: #{tpu_custom_call.1} parent=5 // pred_check
        %p202 = pneg %p201
      $region30: #{tpu_custom_call.1} parent=5 // pred_check_branch
        %204 = sbr.rel (%p202) target = $region32
      $region31: #{tpu_custom_call.1} parent=5 // pred_region
        // Predicated region
        $region33: #{tpu_custom_call.1} parent=31 // pred_check
          %p205 = pneg %p38
        $region34: #{tpu_custom_call.1} parent=31 // pred_check_branch
          %207 = sbr.rel (%p205) target = $region36
        $region35: #{tpu_custom_call.1} parent=31 // pred_region
          %s208 = sand.u32 %s28, 1
          %s209 = scalar_lea.sflag [#allocation5], %s208
          %s210 = sand.u32 %s28, 1
          %s211 = smul.addr %s210, 16
          %s212 = scalar_lea.vmem [#allocation4], %s211
          %s213 = smul.u32 2, %s18
          %s215 = ssub.s32 256, 256
          %216 = vsyncadd %s209, %s215
          %s217 = smul.addr %s213, 128
          %s218 = scalar_lea.hbm %s0, %s217
          %s219 = sshll.u32 %s212, 4
          %s220 = int_to_ptr.vmem [resolvable:$true] %s219
          %225 = dma.hbm_to_vmem [thread:$0]  %s218, 256, %s220, %s209, 128, 128, 8
        $region36: #{tpu_custom_call.1} parent=31 // pred_fallthru
          _
      $region32: #{tpu_custom_call.1} parent=5 // pred_fallthru
        _
      %p226 = scmp.le.s32.totalorder 1, %s18
      %p227 = scmp.lt.s32.totalorder %s18, 3
      %p228 = pnand %p226, %p227
      %p229 = pneg %p228
      // Predicated region
      $region37: #{tpu_custom_call.1} parent=5 // pred_check
        _
      $region38: #{tpu_custom_call.1} parent=5 // pred_check_branch
        %231 = sbr.rel (%p228) target = $region40
      $region39: #{tpu_custom_call.1} parent=5 // pred_region
        %s232 = ssub.s32 %s18, 1
        %s233 = sand.u32 %s31, 1
        %s234 = scalar_lea.sflag [#allocation5], %s233
        %s235 = sand.u32 %s31, 1
        %s236 = smul.addr %s235, 16
        %s237 = scalar_lea.vmem [#allocation4], %s236
        // Predicated region
        $region41: #{tpu_custom_call.1} parent=39 // pred_check
          %p238 = pneg %p44
        $region42: #{tpu_custom_call.1} parent=39 // pred_check_branch
          %240 = sbr.rel (%p238) target = $region44
        $region43: #{tpu_custom_call.1} parent=39 // pred_region
          %241 = dma.done %s234, 256
        $region44: #{tpu_custom_call.1} parent=39 // pred_fallthru
          _
        // Predicated region
        $region45: #{tpu_custom_call.1} parent=39 // pred_check
          %p242 = pneg %p65
        $region46: #{tpu_custom_call.1} parent=39 // pred_check_branch
          %244 = sbr.rel (%p242) target = $region48
        $region47: #{tpu_custom_call.1} parent=39 // pred_region
          %245 = dma.done [#allocation8], 3456
        $region48: #{tpu_custom_call.1} parent=39 // pred_fallthru
          _
        // Predicated region
        $region49: #{tpu_custom_call.1} parent=39 // pred_check
          %p246 = pneg %p107
        $region50: #{tpu_custom_call.1} parent=39 // pred_check_branch
          %248 = sbr.rel (%p246) target = $region52
        $region51: #{tpu_custom_call.1} parent=39 // pred_region
          %249 = dma.done [#allocation8], 6912
        $region52: #{tpu_custom_call.1} parent=39 // pred_fallthru
          _
        %s250 = sand.u32 %s31, 1
        %s251 = scalar_lea.sflag [#allocation5], %s250
        %s252 = sand.u32 %s31, 1
        %s253 = smul.addr %s252, 16
        %s254 = scalar_lea.vmem [#allocation4], %s253
        %p255 = pneg %p44
        %p256 = pneg %p41
        %p257 = pneg %p65
        %p258 = pneg %p62
        %p259 = pneg %p86
        %p260 = pneg %p83
        %p261 = pneg %p107
        %p262 = pneg %p104
        %p263 = pneg %p128
        %p264 = pneg %p125
        %p265 = pneg %p154
        %p266 = pneg %p151
        %s267 = sand.u32 %s141, 1
        %s268 = scalar_lea.sflag [#allocation6], %s267
        %s269 = sand.u32 %s141, 1
        %s270 = smul.addr %s269, 16
        %s271 = scalar_lea.vmem [#allocation10], %s270
        %s272 = smul.u32 2, %s23
        %s273 = smul.u32 2, %s23
        %v274 = vld [vmem:[%s237] sm:$0xff]
        %v275 = vld [vmem:[%s237 + $0x8] sm:$0xff]
        %276 = vst [vmem:[#allocation2] sm:$0xff] 0.0
        %vm277 = vcmask 719872
        %278 = vst.msk [vmem:[#allocation2 + $0x8] sm:$0xff] %vm277, 0.0
        %279 = vst [vmem:[#allocation2 + $0x10] sm:$0xff] 0.0
        %280 = vst.msk [vmem:[#allocation2 + $0x18] sm:$0xff] %vm277, 0.0
        %283 = vrot.lane.b32.xlu0 %v274, 76
        %v284 = vpop.permute.xlu0 %283
        %285 = vrot.lane.b32.xlu0 %v275, 76
        %v286 = vpop.permute.xlu0 %285
        %vm289 = vcmask 1048160
        %290 = vst.msk [vmem:[#allocation2] sm:$0xff] %vm289, %v284
        %vm291 = vcmask 97280
        %292 = vst.msk [vmem:[#allocation2 + $0x8] sm:$0xff] %vm291, %v284
        %293 = vst.msk [vmem:[#allocation2 + $0x10] sm:$0xff] %vm289, %v286
        %294 = vst.msk [vmem:[#allocation2 + $0x18] sm:$0xff] %vm291, %v286
        %vm295 = vcmask 1040384
        %v296 = vrot.slane %v274, 7
        %v297 = vrot.slane %v275, 7
        %v298 = vsel %vm295, %v296, %v297
        %299 = vrot.lane.b32.xlu0 %v296, 4
        %v300 = vpop.permute.xlu0 %299
        %301 = vrot.lane.b32.xlu0 %v298, 4
        %v302 = vpop.permute.xlu0 %301
        %vm305 = vcmask 556065
        %306 = vst.msk [vmem:[#allocation2] sm:$0xfe] %vm305, %v300
        %vm307 = vcmask 556064
        %308 = vst.msk [vmem:[#allocation2 + $0x10] sm:$0xff] %vm307, %v302
        %vm309 = vcmask 1046528
        %v310 = vrot.slane %v274, 1
        %v311 = vrot.slane %v275, 1
        %v312 = vsel %vm309, %v310, %v311
        %313 = vrot.lane.b32.xlu0 %v312, 20
        %v314 = vpop.permute.xlu0 %313
        %315 = vrot.lane.b32.xlu0 %v311, 20
        %v316 = vpop.permute.xlu0 %315
        %vm319 = vcmask 687264
        %320 = vst.msk [vmem:[#allocation2 + $0x8] sm:$0xff] %vm319, %v314
        %vm321 = vcmask 686240
        %322 = vst.msk [vmem:[#allocation2 + $0x18] sm:$0x7f] %vm321, %v316
        %v323 = vld [vmem:[#allocation2] sm:$0xff]
        %v324 = vld [vmem:[#allocation2 + $0x8] sm:$0xff]
        %v325 = vld [vmem:[#allocation2 + $0x10] sm:$0xff]
        %v326 = vld [vmem:[#allocation2 + $0x18] sm:$0xff]
        %v327 = vld [vmem:[#allocation7] sm:$0xff]
        %v328 = vld [vmem:[#allocation7 + $0x8] sm:$0xff]
        %v329 = vld [vmem:[#allocation7 + $0x10] sm:$0xff]
        %v330 = vld [vmem:[#allocation7 + $0x18] sm:$0xff]
        %v331 = vld [vmem:[#allocation7 + $0x20] sm:$0xff]
        %v332 = vld [vmem:[#allocation7 + $0x28] sm:$0xff]
        %v333 = vld [vmem:[#allocation7 + $0x30] sm:$0xff]
        %v334 = vld [vmem:[#allocation7 + $0x38] sm:$0xff]
        %v335 = vld [vmem:[#allocation7 + $0x40] sm:$0xff]
        %v336 = vld [vmem:[#allocation7 + $0x48] sm:$0xff]
        %v337 = vld [vmem:[#allocation7 + $0x50] sm:$0xff]
        %v338 = vld [vmem:[#allocation7 + $0x58] sm:$0xff]
        %v339 = vld [vmem:[#allocation7 + $0x60] sm:$0xff]
        %v340 = vld [vmem:[#allocation7 + $0x68] sm:$0xff]
        %v341 = vld [vmem:[#allocation7 + $0x70] sm:$0xff]
        %v342 = vld [vmem:[#allocation7 + $0x78] sm:$0xff]
        %v343 = vld [vmem:[#allocation7 + $0x80] sm:$0xff]
        %v344 = vld [vmem:[#allocation7 + $0x88] sm:$0xff]
        %v345 = vld [vmem:[#allocation7 + $0x90] sm:$0xff]
        %v346 = vld [vmem:[#allocation7 + $0x98] sm:$0xff]
        %v347 = vld [vmem:[#allocation7 + $0xa0] sm:$0xff]
        %v348 = vld [vmem:[#allocation7 + $0xa8] sm:$0xff]
        %v349 = vld [vmem:[#allocation7 + $0xb0] sm:$0xff]
        %v350 = vld [vmem:[#allocation7 + $0xb8] sm:$0xff]
        %v351 = vld [vmem:[#allocation7 + $0xc0] sm:$0xff]
        %v352 = vld [vmem:[#allocation7 + $0xc8] sm:$0xff]
        %v353 = vld [vmem:[#allocation7 + $0xd0] sm:$0xff]
        %v354 = vld [vmem:[%s2] sm:$0x1]
        %v356 = vlaneseq
        %v357 = vshrl.u32 %v356, 7
        %v358 = vsub.s32 0, %v357
        %v359 = vrot.slane %v354, %v358
        %v362 = vsel %vm277, %v324, 0
        %v365 = vsel %vm277, %v326, 0
        %367 = vmatprep.subr.mxu0 0.0
        %368 = vmatpush1.msra.mxu0 %v342
        %369 = vmatprep.subr.mxu0 0.0
        %370 = vmatpush1.msra.mxu0 %v341
        %371 = vmatprep.subr.mxu0 0.0
        %372 = vmatpush1.msra.mxu0 %v340
        %373 = vmatprep.subr.mxu0 0.0
        %374 = vmatpush1.msra.mxu0 %v339
        %375 = vmatprep.subr.mxu0 0.0
        %376 = vmatpush1.msra.mxu0 %v338
        %377 = vmatprep.subr.mxu0 0.0
        %378 = vmatpush1.msra.mxu0 %v337
        %379 = vmatprep.subr.mxu0 0.0
        %380 = vmatpush1.msra.mxu0 %v336
        %381 = vmatprep.subr.mxu0 0.0
        %382 = vmatpush1.msra.mxu0 %v335
        %383 = vmatprep.subr.mxu0 0.0
        %384 = vmatpush1.msra.mxu0 %v334
        %385 = vmatprep.subr.mxu0 0.0
        %386 = vmatpush1.msra.mxu0 %v333
        %387 = vmatprep.subr.mxu0 0.0
        %388 = vmatpush1.msra.mxu0 %v332
        %389 = vmatprep.subr.mxu0 0.0
        %390 = vmatpush1.msra.mxu0 %v331
        %391 = vmatprep.subr.mxu0 0.0
        %392 = vmatpush1.msra.mxu0 %v330
        %393 = vmatprep.subr.mxu0 0.0
        %394 = vmatpush1.msra.mxu0 %v329
        %395 = vmatprep.subr.mxu0 0.0
        %396 = vmatpush1.msra.mxu0 %v328
        %397 = vmatprep.subr.mxu0 0.0
        %398 = vmatpush1.msra.mxu0 %v327
        %399 = vmatprep.subr.mxu0 0.0
        %400 = vmatpush2.msra.mxu0 0.0
        %401 = vmatprep.subr.mxu0 0.0
        %402 = vmatpush2.msra.mxu0 0.0
        %403 = vmatprep.subr.mxu0 0.0
        %404 = vmatpush2.msra.mxu0 0.0
        %405 = vmatprep.subr.mxu0 0.0
        %406 = vmatpush2.msra.mxu0 0.0
        %407 = vmatprep.subr.mxu0 0.0
        %408 = vmatpush2.msra.mxu0 0.0
        %409 = vmatprep.subr.mxu0 0.0
        %410 = vmatpush2.msra.mxu0 %v353
        %411 = vmatprep.subr.mxu0 0.0
        %412 = vmatpush2.msra.mxu0 %v352
        %413 = vmatprep.subr.mxu0 0.0
        %414 = vmatpush2.msra.mxu0 %v351
        %415 = vmatprep.subr.mxu0 0.0
        %416 = vmatpush2.msra.mxu0 %v350
        %417 = vmatprep.subr.mxu0 0.0
        %418 = vmatpush2.msra.mxu0 %v349
        %419 = vmatprep.subr.mxu0 0.0
        %420 = vmatpush2.msra.mxu0 %v348
        %421 = vmatprep.subr.mxu0 0.0
        %422 = vmatpush2.msra.mxu0 %v347
        %423 = vmatprep.subr.mxu0 0.0
        %424 = vmatpush2.msra.mxu0 %v346
        %425 = vmatprep.subr.mxu0 0.0
        %426 = vmatpush2.msra.mxu0 %v345
        %427 = vmatprep.subr.mxu0 0.0
        %428 = vmatpush2.msra.mxu0 %v344
        %429 = vmatprep.subr.mxu0 0.0
        %430 = vmatpush2.msra.mxu0 %v343
        %431 = vmatprep.mubr.f32.mxu0 %v362
        %432 = vmatmul.mubr.f32.gmra.mxu0 %v323
        %v433 = vpop.f32.mrf.mxu0
        %v434 = vadd.f32 %v359, %v433
        %v435 = vpop.f32.mrf.mxu0
        %436 = vmatprep.mubr.f32.mxu0 %v365
        %437 = vmatmul.mubr.f32.gmra.mxu0 %v325
        %v438 = vpop.f32.mrf.mxu0
        %v439 = vadd.f32 %v359, %v438
        %v440 = vpop.f32.mrf.mxu0
        %441 = vdwg.mxu0
        %v442 = vmax.f32 %v434, 0.0
        %v443 = vmax.f32 %v439, 0.0
        %444 = vst [vmem:[#allocation3] sm:$0xff] 0.0
        %445 = vst [vmem:[#allocation3 + $0x8] sm:$0xff] 0.0
        %446 = vst [vmem:[#allocation3 + $0x10] sm:$0xff] 0.0
        %vm447 = vcmask 392192
        %448 = vst.msk [vmem:[#allocation3 + $0x18] sm:$0xff] %vm447, 0.0
        %449 = vst [vmem:[#allocation3 + $0x20] sm:$0xff] 0.0
        %450 = vst [vmem:[#allocation3 + $0x28] sm:$0xff] 0.0
        %451 = vst [vmem:[#allocation3 + $0x30] sm:$0xff] 0.0
        %452 = vst.msk [vmem:[#allocation3 + $0x38] sm:$0xff] %vm447, 0.0
        %455 = vrot.lane.b32.xlu0 %v442, 24
        %v456 = vpop.permute.xlu0 %455
        %457 = vrot.lane.b32.xlu0 %v443, 24
        %v458 = vpop.permute.xlu0 %457
        %vm461 = vcmask 1047744
        %462 = vst.msk [vmem:[#allocation3 + $0x8] sm:$0xff] %vm461, %v456
        %vm463 = vcmask 195584
        %464 = vst.msk [vmem:[#allocation3 + $0x10] sm:$0xff] %vm463, %v456
        %465 = vst.msk [vmem:[#allocation3 + $0x28] sm:$0xff] %vm461, %v458
        %466 = vst.msk [vmem:[#allocation3 + $0x30] sm:$0xff] %vm463, %v458
        %v467 = vrot.slane %v442, 7
        %v468 = vrot.slane %v443, 7
        %v469 = vsel %vm295, %v467, %v468
        %470 = vrot.lane.b32.xlu0 %v467, 8
        %v471 = vpop.permute.xlu0 %470
        %472 = vrot.lane.b32.xlu0 %v469, 8
        %v473 = vpop.permute.xlu0 %472
        %vm476 = vcmask 1047617
        %477 = vst.msk [vmem:[#allocation3] sm:$0xfe] %vm476, %v471
        %vm478 = vcmask 64513
        %479 = vst.msk [vmem:[#allocation3 + $0x8] sm:$0xfe] %vm478, %v471
        %vm480 = vcmask 1047616
        %481 = vst.msk [vmem:[#allocation3 + $0x20] sm:$0xff] %vm480, %v473
        %vm482 = vcmask 64512
        %483 = vst.msk [vmem:[#allocation3 + $0x28] sm:$0xff] %vm482, %v473
        %v484 = vrot.slane %v442, 1
        %v485 = vrot.slane %v443, 1
        %v486 = vsel %vm309, %v484, %v485
        %487 = vrot.lane.b32.xlu0 %v486, 40
        %v488 = vpop.permute.xlu0 %487
        %489 = vrot.lane.b32.xlu0 %v485, 40
        %v490 = vpop.permute.xlu0 %489
        %vm493 = vcmask 1047872
        %494 = vst.msk [vmem:[#allocation3 + $0x10] sm:$0xff] %vm493, %v488
        %vm495 = vcmask 326656
        %496 = vst.msk [vmem:[#allocation3 + $0x18] sm:$0xff] %vm495, %v488
        %vm497 = vcmask 1046848
        %498 = vst.msk [vmem:[#allocation3 + $0x30] sm:$0x7f] %vm497, %v490
        %vm499 = vcmask 325632
        %500 = vst.msk [vmem:[#allocation3 + $0x38] sm:$0x7f] %vm499, %v490
        %v501 = vld [vmem:[#allocation3] sm:$0xff]
        %v502 = vld [vmem:[#allocation3 + $0x8] sm:$0xff]
        %v503 = vld [vmem:[#allocation3 + $0x10] sm:$0xff]
        %v504 = vld [vmem:[#allocation3 + $0x18] sm:$0xff]
        %v505 = vld [vmem:[#allocation3 + $0x20] sm:$0xff]
        %v506 = vld [vmem:[#allocation3 + $0x28] sm:$0xff]
        %v507 = vld [vmem:[#allocation3 + $0x30] sm:$0xff]
        %v508 = vld [vmem:[#allocation3 + $0x38] sm:$0xff]
        %v509 = vld [vmem:[#allocation9] sm:$0xff]
        %v510 = vld [vmem:[#allocation9 + $0x8] sm:$0xff]
        %v511 = vld [vmem:[#allocation9 + $0x10] sm:$0xff]
        %v512 = vld [vmem:[#allocation9 + $0x18] sm:$0xff]
        %v513 = vld [vmem:[#allocation9 + $0x20] sm:$0xff]
        %v514 = vld [vmem:[#allocation9 + $0x28] sm:$0xff]
        %v515 = vld [vmem:[#allocation9 + $0x30] sm:$0xff]
        %v516 = vld [vmem:[#allocation9 + $0x38] sm:$0xff]
        %v517 = vld [vmem:[#allocation9 + $0x40] sm:$0xff]
        %v518 = vld [vmem:[#allocation9 + $0x48] sm:$0xff]
        %v519 = vld [vmem:[#allocation9 + $0x50] sm:$0xff]
        %v520 = vld [vmem:[#allocation9 + $0x58] sm:$0xff]
        %v521 = vld [vmem:[#allocation9 + $0x60] sm:$0xff]
        %v522 = vld [vmem:[#allocation9 + $0x68] sm:$0xff]
        %v523 = vld [vmem:[#allocation9 + $0x70] sm:$0xff]
        %v524 = vld [vmem:[#allocation9 + $0x78] sm:$0xff]
        %v525 = vld [vmem:[#allocation9 + $0x80] sm:$0xff]
        %v526 = vld [vmem:[#allocation9 + $0x88] sm:$0xff]
        %v527 = vld [vmem:[#allocation9 + $0x90] sm:$0xff]
        %v528 = vld [vmem:[#allocation9 + $0x98] sm:$0xff]
        %v529 = vld [vmem:[#allocation9 + $0xa0] sm:$0xff]
        %v530 = vld [vmem:[#allocation9 + $0xa8] sm:$0xff]
        %v531 = vld [vmem:[#allocation9 + $0xb0] sm:$0xff]
        %v532 = vld [vmem:[#allocation9 + $0xb8] sm:$0xff]
        %v533 = vld [vmem:[#allocation9 + $0xc0] sm:$0xff]
        %v534 = vld [vmem:[#allocation9 + $0xc8] sm:$0xff]
        %v535 = vld [vmem:[#allocation9 + $0xd0] sm:$0xff]
        %v536 = vld [vmem:[#allocation9 + $0xd8] sm:$0xff]
        %v537 = vld [vmem:[#allocation9 + $0xe0] sm:$0xff]
        %v538 = vld [vmem:[#allocation9 + $0xe8] sm:$0xff]
        %v539 = vld [vmem:[#allocation9 + $0xf0] sm:$0xff]
        %v540 = vld [vmem:[#allocation9 + $0xf8] sm:$0xff]
        %v541 = vld [vmem:[#allocation9 + $0x100] sm:$0xff]
        %v542 = vld [vmem:[#allocation9 + $0x108] sm:$0xff]
        %v543 = vld [vmem:[#allocation9 + $0x110] sm:$0xff]
        %v544 = vld [vmem:[#allocation9 + $0x118] sm:$0xff]
        %v545 = vld [vmem:[#allocation9 + $0x120] sm:$0xff]
        %v546 = vld [vmem:[#allocation9 + $0x128] sm:$0xff]
        %v547 = vld [vmem:[#allocation9 + $0x130] sm:$0xff]
        %v548 = vld [vmem:[#allocation9 + $0x138] sm:$0xff]
        %v549 = vld [vmem:[#allocation9 + $0x140] sm:$0xff]
        %v550 = vld [vmem:[#allocation9 + $0x148] sm:$0xff]
        %v551 = vld [vmem:[#allocation9 + $0x150] sm:$0xff]
        %v552 = vld [vmem:[#allocation9 + $0x158] sm:$0xff]
        %v553 = vld [vmem:[#allocation9 + $0x160] sm:$0xff]
        %v554 = vld [vmem:[#allocation9 + $0x168] sm:$0xff]
        %v555 = vld [vmem:[#allocation9 + $0x170] sm:$0xff]
        %v556 = vld [vmem:[#allocation9 + $0x178] sm:$0xff]
        %v557 = vld [vmem:[#allocation9 + $0x180] sm:$0xff]
        %v558 = vld [vmem:[#allocation9 + $0x188] sm:$0xff]
        %v559 = vld [vmem:[#allocation9 + $0x190] sm:$0xff]
        %v560 = vld [vmem:[#allocation9 + $0x198] sm:$0xff]
        %v561 = vld [vmem:[#allocation9 + $0x1a0] sm:$0xff]
        %v562 = vld [vmem:[#allocation9 + $0x1a8] sm:$0xff]
        %v563 = vld [vmem:[%s4] sm:$0x1]
        %v565 = vlaneseq
        %v566 = vshrl.u32 %v565, 7
        %v567 = vsub.s32 0, %v566
        %v568 = vrot.slane %v563, %v567
        %v571 = vsel %vm447, %v504, 0
        %v574 = vsel %vm447, %v508, 0
        %576 = vmatprep.subr.mxu0 0.0
        %577 = vmatpush1.msra.mxu0 %v524
        %578 = vmatprep.subr.mxu0 0.0
        %579 = vmatpush1.msra.mxu0 %v523
        %580 = vmatprep.subr.mxu0 0.0
        %581 = vmatpush1.msra.mxu0 %v522
        %582 = vmatprep.subr.mxu0 0.0
        %583 = vmatpush1.msra.mxu0 %v521
        %584 = vmatprep.subr.mxu0 0.0
        %585 = vmatpush1.msra.mxu0 %v520
        %586 = vmatprep.subr.mxu0 0.0
        %587 = vmatpush1.msra.mxu0 %v519
        %588 = vmatprep.subr.mxu0 0.0
        %589 = vmatpush1.msra.mxu0 %v518
        %590 = vmatprep.subr.mxu0 0.0
        %591 = vmatpush1.msra.mxu0 %v517
        %592 = vmatprep.subr.mxu0 0.0
        %593 = vmatpush1.msra.mxu0 %v516
        %594 = vmatprep.subr.mxu0 0.0
        %595 = vmatpush1.msra.mxu0 %v515
        %596 = vmatprep.subr.mxu0 0.0
        %597 = vmatpush1.msra.mxu0 %v514
        %598 = vmatprep.subr.mxu0 0.0
        %599 = vmatpush1.msra.mxu0 %v513
        %600 = vmatprep.subr.mxu0 0.0
        %601 = vmatpush1.msra.mxu0 %v512
        %602 = vmatprep.subr.mxu0 0.0
        %603 = vmatpush1.msra.mxu0 %v511
        %604 = vmatprep.subr.mxu0 0.0
        %605 = vmatpush1.msra.mxu0 %v510
        %606 = vmatprep.subr.mxu0 0.0
        %607 = vmatpush1.msra.mxu0 %v509
        %608 = vmatprep.subr.mxu0 0.0
        %609 = vmatpush2.msra.mxu0 %v540
        %610 = vmatprep.subr.mxu0 0.0
        %611 = vmatpush2.msra.mxu0 %v539
        %612 = vmatprep.subr.mxu0 0.0
        %613 = vmatpush2.msra.mxu0 %v538
        %614 = vmatprep.subr.mxu0 0.0
        %615 = vmatpush2.msra.mxu0 %v537
        %616 = vmatprep.subr.mxu0 0.0
        %617 = vmatpush2.msra.mxu0 %v536
        %618 = vmatprep.subr.mxu0 0.0
        %619 = vmatpush2.msra.mxu0 %v535
        %620 = vmatprep.subr.mxu0 0.0
        %621 = vmatpush2.msra.mxu0 %v534
        %622 = vmatprep.subr.mxu0 0.0
        %623 = vmatpush2.msra.mxu0 %v533
        %624 = vmatprep.subr.mxu0 0.0
        %625 = vmatpush2.msra.mxu0 %v532
        %626 = vmatprep.subr.mxu0 0.0
        %627 = vmatpush2.msra.mxu0 %v531
        %628 = vmatprep.subr.mxu0 0.0
        %629 = vmatpush2.msra.mxu0 %v530
        %630 = vmatprep.subr.mxu0 0.0
        %631 = vmatpush2.msra.mxu0 %v529
        %632 = vmatprep.subr.mxu0 0.0
        %633 = vmatpush2.msra.mxu0 %v528
        %634 = vmatprep.subr.mxu0 0.0
        %635 = vmatpush2.msra.mxu0 %v527
        %636 = vmatprep.subr.mxu0 0.0
        %637 = vmatpush2.msra.mxu0 %v526
        %638 = vmatprep.subr.mxu0 0.0
        %639 = vmatpush2.msra.mxu0 %v525
        %640 = vmatprep.mubr.f32.mxu0 %v502
        %641 = vmatmul.mubr.f32.gmra.mxu0 %v501
        %v642 = vpop.f32.mrf.mxu0
        %v643 = vadd.f32 %v568, %v642
        %v644 = vpop.f32.mrf.mxu0
        %645 = vmatprep.mubr.f32.mxu0 %v506
        %646 = vmatmul.mubr.f32.gmra.mxu0 %v505
        %v647 = vpop.f32.mrf.mxu0
        %v648 = vadd.f32 %v568, %v647
        %v649 = vpop.f32.mrf.mxu0
        %650 = vdwg.mxu0
        %651 = vmatprep.subr.mxu0 0.0
        %652 = vmatpush1.msra.mxu0 %v556
        %653 = vmatprep.subr.mxu0 0.0
        %654 = vmatpush1.msra.mxu0 %v555
        %655 = vmatprep.subr.mxu0 0.0
        %656 = vmatpush1.msra.mxu0 %v554
        %657 = vmatprep.subr.mxu0 0.0
        %658 = vmatpush1.msra.mxu0 %v553
        %659 = vmatprep.subr.mxu0 0.0
        %660 = vmatpush1.msra.mxu0 %v552
        %661 = vmatprep.subr.mxu0 0.0
        %662 = vmatpush1.msra.mxu0 %v551
        %663 = vmatprep.subr.mxu0 0.0
        %664 = vmatpush1.msra.mxu0 %v550
        %665 = vmatprep.subr.mxu0 0.0
        %666 = vmatpush1.msra.mxu0 %v549
        %667 = vmatprep.subr.mxu0 0.0
        %668 = vmatpush1.msra.mxu0 %v548
        %669 = vmatprep.subr.mxu0 0.0
        %670 = vmatpush1.msra.mxu0 %v547
        %671 = vmatprep.subr.mxu0 0.0
        %672 = vmatpush1.msra.mxu0 %v546
        %673 = vmatprep.subr.mxu0 0.0
        %674 = vmatpush1.msra.mxu0 %v545
        %675 = vmatprep.subr.mxu0 0.0
        %676 = vmatpush1.msra.mxu0 %v544
        %677 = vmatprep.subr.mxu0 0.0
        %678 = vmatpush1.msra.mxu0 %v543
        %679 = vmatprep.subr.mxu0 0.0
        %680 = vmatpush1.msra.mxu0 %v542
        %681 = vmatprep.subr.mxu0 0.0
        %682 = vmatpush1.msra.mxu0 %v541
        %683 = vmatprep.subr.mxu0 0.0
        %684 = vmatpush2.msra.mxu0 0.0
        %685 = vmatprep.subr.mxu0 0.0
        %686 = vmatpush2.msra.mxu0 0.0
        %687 = vmatprep.subr.mxu0 0.0
        %688 = vmatpush2.msra.mxu0 0.0
        %689 = vmatprep.subr.mxu0 0.0
        %690 = vmatpush2.msra.mxu0 0.0
        %691 = vmatprep.subr.mxu0 0.0
        %692 = vmatpush2.msra.mxu0 0.0
        %693 = vmatprep.subr.mxu0 0.0
        %694 = vmatpush2.msra.mxu0 0.0
        %695 = vmatprep.subr.mxu0 0.0
        %696 = vmatpush2.msra.mxu0 0.0
        %697 = vmatprep.subr.mxu0 0.0
        %698 = vmatpush2.msra.mxu0 0.0
        %699 = vmatprep.subr.mxu0 0.0
        %700 = vmatpush2.msra.mxu0 0.0
        %701 = vmatprep.subr.mxu0 0.0
        %702 = vmatpush2.msra.mxu0 0.0
        %703 = vmatprep.subr.mxu0 0.0
        %704 = vmatpush2.msra.mxu0 %v562
        %705 = vmatprep.subr.mxu0 0.0
        %706 = vmatpush2.msra.mxu0 %v561
        %707 = vmatprep.subr.mxu0 0.0
        %708 = vmatpush2.msra.mxu0 %v560
        %709 = vmatprep.subr.mxu0 0.0
        %710 = vmatpush2.msra.mxu0 %v559
        %711 = vmatprep.subr.mxu0 0.0
        %712 = vmatpush2.msra.mxu0 %v558
        %713 = vmatprep.subr.mxu0 0.0
        %714 = vmatpush2.msra.mxu0 %v557
        %715 = vmatprep.mubr.f32.mxu0 %v571
        %716 = vmatmul.mubr.f32.gmra.mxu0 %v503
        %v717 = vpop.f32.mrf.mxu0
        %v718 = vadd.f32 %v643, %v717
        %v719 = vpop.f32.mrf.mxu0
        %720 = vmatprep.mubr.f32.mxu0 %v574
        %721 = vmatmul.mubr.f32.gmra.mxu0 %v507
        %v722 = vpop.f32.mrf.mxu0
        %v723 = vadd.f32 %v648, %v722
        %v724 = vpop.f32.mrf.mxu0
        %725 = vdwg.mxu0
        %v726 = vmax.f32 %v718, 0.0
        %v727 = vmax.f32 %v723, 0.0
        %728 = vst [vmem:[%s271] sm:$0xff] %v726
        %729 = vst [vmem:[%s271 + $0x8] sm:$0xff] %v727
        %s730 = sand.u32 %s141, 1
        %s731 = scalar_lea.sflag [#allocation6], %s730
        %s732 = sand.u32 %s141, 1
        %s733 = smul.addr %s732, 16
        %s734 = scalar_lea.vmem [#allocation10], %s733
        // Predicated region
        $region53: #{tpu_custom_call.1} parent=39 // pred_check
          %p735 = pneg %p151
        $region54: #{tpu_custom_call.1} parent=39 // pred_check_branch
          %737 = sbr.rel (%p735) target = $region56
        $region55: #{tpu_custom_call.1} parent=39 // pred_region
          %s738 = smul.u32 2, %s23
          %s740 = ssub.s32 256, 256
          %741 = vsyncadd %s731, %s740
          %s742 = smul.addr %s738, 128
          %s743 = scalar_lea.hbm %s5, %s742
          %s744 = sshll.u32 %s734, 4
          %s745 = int_to_ptr.vmem [resolvable:$true] %s744
          %750 = dma.vmem_to_hbm [thread:$0]  %s745, 256, %s743, %s731, 128, 128, 8
        $region56: #{tpu_custom_call.1} parent=39 // pred_fallthru
          _
      $region40: #{tpu_custom_call.1} parent=5 // pred_fallthru
        _
      %p751 = scmp.le.s32.totalorder 2, %s18
      // Predicated region
      $region57: #{tpu_custom_call.1} parent=5 // pred_check
        %p752 = pneg %p751
      $region58: #{tpu_custom_call.1} parent=5 // pred_check_branch
        %754 = sbr.rel (%p752) target = $region60
      $region59: #{tpu_custom_call.1} parent=5 // pred_region
        %s755 = ssub.s32 %s18, 2
        // Predicated region
        $region61: #{tpu_custom_call.1} parent=59 // pred_check
          %p756 = pneg %p157
        $region62: #{tpu_custom_call.1} parent=59 // pred_check_branch
          %758 = sbr.rel (%p756) target = $region64
        $region63: #{tpu_custom_call.1} parent=59 // pred_region
          %s759 = sand.u32 %s142, 1
          %s760 = scalar_lea.sflag [#allocation6], %s759
          %s761 = sand.u32 %s142, 1
          %s762 = smul.addr %s761, 16
          %s763 = scalar_lea.vmem [#allocation10], %s762
          %764 = dma.done %s760, 256
        $region64: #{tpu_custom_call.1} parent=59 // pred_fallthru
          _
      $region60: #{tpu_custom_call.1} parent=5 // pred_fallthru
        _
    $region6: #{tpu_custom_call.1} parent=1 // loop_footer
      %s22 = sadd.s32 1, %s18
    $region7: #{tpu_custom_call.1} parent=1 // loop_footer_branch
      %17 = sbr.rel target = $region3
    $region8: #{tpu_custom_call.1} parent=1 // loop_exit
      _
    %765 = vsyncpa [#allocation5], 1
    %s766 = scalar_lea.sflag [#allocation5], 1
    %767 = vsyncpa %s766, 1
    %768 = vsyncpa [#allocation8], 1
    %769 = vsyncpa [#allocation6], 1
    %s770 = scalar_lea.sflag [#allocation6], 1
    %771 = vsyncpa %s770, 1

</llo_original>
